<compile_context>
chip_gen: v6e
topology: v6e:2x2x1
jax: 0.10.0
libtpu: 0.0.40
codegen_flags: <defaults>
</compile_context>

<pallas_src>
import functools

import jax
import jax.numpy as jnp
from jax.experimental import pallas as pl
from jax.experimental.pallas import tpu as pltpu


def _round_up(x, m):
    return ((x + m - 1) // m) * m


def actor_forward_kernel(
    s_ref,              # (TB, S)
    w1_ref, b1_ref,     # (S, H), (1, H)
    w2_ref, b2_ref,     # (H, H), (1, H)
    wh_ref, bh_ref,     # (H, P), (1, P)   fused head (mu | log_std | mu | pad)
    out_ref,            # (TB, P)
    *, action_dim, max_action,
):
    mm_dtype = w1_ref.dtype   # bf16 on the fast path, f32 otherwise

    # fc1 + relu  (fp32 accumulation on the MXU regardless of operand dtype)
    h = jnp.dot(s_ref[...], w1_ref[...], preferred_element_type=jnp.float32)
    h = jnp.maximum(h + b1_ref[...], 0.0).astype(mm_dtype)

    # fc2 + relu
    h = jnp.dot(h, w2_ref[...], preferred_element_type=jnp.float32)
    h = jnp.maximum(h + b2_ref[...], 0.0).astype(mm_dtype)

    # Fused head: one MXU matmul produces mu, log_std and the action lanes.
    head = jnp.dot(h, wh_ref[...], preferred_element_type=jnp.float32)
    head = head + bh_ref[...]

    # Per-lane epilogue (VPU/EUP), single unmasked lane-dense store:
    #   lanes [0, A)    -> mu                       (identity)
    #   lanes [A, 2A)   -> std = exp(clip(log_std, -20, 2))
    #   lanes [2A, 3A)  -> action = tanh(mu) * max_action
    lane = jax.lax.broadcasted_iota(jnp.int32, head.shape, dimension=1)
    std = jnp.exp(jnp.clip(head, -20.0, 2.0))
    act = jnp.tanh(head) * max_action
    out = jnp.where(lane < action_dim, head,
                    jnp.where(lane < 2 * action_dim, std, act))
    out_ref[...] = out.astype(out_ref.dtype)


def fuse_actor_params(params, dtype=jnp.float32):
    """Fuse the two head Linears into one lane-dense (H, 128) slab; optionally
    cast all params to `dtype` (bf16 fast path on v6e/v7x; accumulation stays
    fp32 inside the kernel)."""
    w1, b1, w2, b2, wmu, bmu, wls, bls = params
    H, A = wmu.shape
    P = max(_round_up(3 * A, 128), 128)

    w_head = jnp.zeros((H, P), jnp.float32)
    w_head = w_head.at[:, 0:A].set(wmu)
    w_head = w_head.at[:, A:2 * A].set(wls)
    w_head = w_head.at[:, 2 * A:3 * A].set(wmu)    # duplicate mu -> action lanes

    b_head = jnp.zeros((1, P), jnp.float32)
    b_head = b_head.at[:, 0:A].set(bmu)
    b_head = b_head.at[:, A:2 * A].set(bls)
    b_head = b_head.at[:, 2 * A:3 * A].set(bmu)

    fused = tuple(x.astype(dtype) for x in (w1, b1, w2, b2, w_head, b_head))
    return fused, A, P


def _choose_batch_tile(B, block_b):
    """Batch tile: multiple of 8 (sublane granularity) or the full batch dim.

    - B <= 256: one tile covering the whole batch (overhead-bound regime).
    - 256 < B <= block_b: two tiles so the "parallel" grid axis can shard
      across v7x's two TensorCores.
    - B > block_b: block_b-row tiles (clamped to [8, 2048]; 2048 keeps the
      double-buffered footprint well inside v7x's 64 MiB VMEM).
    The ragged last block, if any, is masked by Pallas (no wrapper pad).
    """
    block_b = max(8, min((block_b // 8) * 8, 2048))
    if B <= block_b:
        if B <= 256:
            return B
        return max(8, _round_up((B + 1) // 2, 8))
    return block_b


def actor_forward(state, fused_params, action_dim, max_action, *,
                  block_b=1024, out_dtype=jnp.float32):
    """Fused Actor forward. Returns (mu, std, action) where
    action = tanh(mu) * max_action (i.e. select_action fused in)."""
    w1, b1, w2, b2, wh, bh = fused_params
    B, S = state.shape
    H = w1.shape[1]
    P = wh.shape[1]
    A = action_dim

    TB = _choose_batch_tile(B, block_b)
    grid = (pl.cdiv(B, TB),)   # ragged last block handled by Pallas masking

    in_specs = [
        pl.BlockSpec((TB, S), lambda i: (i, 0)),   # state: tiled over batch
        pl.BlockSpec((S, H), lambda i: (0, 0)),    # w1: full array, constant
        pl.BlockSpec((1, H), lambda i: (0, 0)),    # b1
        pl.BlockSpec((H, H), lambda i: (0, 0)),    # w2
        pl.BlockSpec((1, H), lambda i: (0, 0)),    # b2
        pl.BlockSpec((H, P), lambda i: (0, 0)),    # fused head weight
        pl.BlockSpec((1, P), lambda i: (0, 0)),    # fused head bias
    ]
    out_specs = pl.BlockSpec((TB, P), lambda i: (i, 0))

    kernel = functools.partial(
        actor_forward_kernel, action_dim=A, max_action=float(max_action))

    weight_bytes = sum(int(x.size) * x.dtype.itemsize for x in fused_params)
    cost = pl.CostEstimate(
        flops=2 * B * (S * H + H * H + H * P),
        transcendentals=2 * B * P,                      # exp + tanh over the slab
        bytes_accessed=int(B * S * state.dtype.itemsize
                           + B * P * jnp.dtype(out_dtype).itemsize
                           + weight_bytes),
    )

    out = pl.pallas_call(
        kernel,
        out_shape=jax.ShapeDtypeStruct((B, P), out_dtype),
        grid=grid,
        in_specs=in_specs,
        out_specs=out_specs,
        compiler_params=pltpu.CompilerParams(
            dimension_semantics=("parallel",)),
        cost_estimate=cost,
    )(state, w1, b1, w2, b2, wh, bh)

    mu = out[:, 0:A]
    std = out[:, A:2 * A]
    action = out[:, 2 * A:3 * A]
    return mu, std, action


def init_actor_params(key, state_dim, hidden_dim, action_dim):
    """Deterministic synthetic params (PyTorch-Linear-like init), stored as
    (in, out) weights plus (1, out) biases."""
    ks = jax.random.split(key, 8)

    def linear(kw, kb, fan_in, fan_out):
        bound = 1.0 / jnp.sqrt(fan_in)
        w = jax.random.uniform(kw, (fan_in, fan_out), jnp.float32, -bound, bound)
        b = jax.random.uniform(kb, (1, fan_out), jnp.float32, -bound, bound)
        return w, b

    w1, b1 = linear(ks[0], ks[1], state_dim, hidden_dim)
    w2, b2 = linear(ks[2], ks[3], hidden_dim, hidden_dim)
    wmu, bmu = linear(ks[4], ks[5], hidden_dim, action_dim)
    wls, bls = linear(ks[6], ks[7], hidden_dim, action_dim)
    return (w1, b1, w2, b2, wmu, bmu, wls, bls)


def actor_forward_ref(state, params, max_action):
    """Pure-JAX reference mirroring the PyTorch module exactly."""
    w1, b1, w2, b2, wmu, bmu, wls, bls = params
    x = jnp.maximum(state @ w1 + b1, 0.0)
    x = jnp.maximum(x @ w2 + b2, 0.0)
    mu = x @ wmu + bmu
    log_std = jnp.clip(x @ wls + bls, -20.0, 2.0)
    std = jnp.exp(log_std)
    action = jnp.tanh(mu) * max_action   # select_action
    return mu, std, action


if __name__ == "__main__":
    batch, state_dim, hidden_dim, action_dim = 256, 16, 32, 8
    max_action = 1.0

    key = jax.random.PRNGKey(0)
    k_state, k_params = jax.random.split(key)

    state = jax.random.normal(k_state, (batch, state_dim), jnp.float32)
    params = init_actor_params(k_params, state_dim, hidden_dim, action_dim)
    mu_ref, std_ref, act_ref = actor_forward_ref(state, params, max_action)

    # 1) fp32 path: single full-batch tile (grid=(1,)), tight tolerance.
    fused_f32, A, P = fuse_actor_params(params, jnp.float32)
    mu, std, action = actor_forward(state, fused_f32, action_dim, max_action)
    jax.block_until_ready((mu, std, action))
    assert jnp.allclose(mu, mu_ref, atol=1e-5, rtol=1e-5)
    assert jnp.allclose(std, std_ref, atol=1e-5, rtol=1e-5)
    assert jnp.allclose(action, act_ref, atol=1e-5, rtol=1e-5)

    # 2) Ragged batch, no wrapper pad: B=100 with 64-row tiles -> grid of 2,
    #    last block has 36 valid rows masked by Pallas.
    mu_r, std_r, act_r = actor_forward(state[:100], fused_f32, action_dim,
                                       max_action, block_b=64)
    jax.block_until_ready((mu_r, std_r, act_r))
    assert jnp.allclose(mu_r, mu_ref[:100], atol=1e-5, rtol=1e-5)
    assert jnp.allclose(std_r, std_ref[:100], atol=1e-5, rtol=1e-5)
    assert jnp.allclose(act_r, act_ref[:100], atol=1e-5, rtol=1e-5)

    # 3) bf16 inputs + bf16 output slab (v6e/v7x fast path), fp32 accumulation.
    fused_bf16, _, _ = fuse_actor_params(params, jnp.bfloat16)
    mu_b, std_b, act_b = actor_forward(state.astype(jnp.bfloat16), fused_bf16,
                                       action_dim, max_action,
                                       out_dtype=jnp.bfloat16)
    jax.block_until_ready((mu_b, std_b, act_b))
    assert jnp.allclose(mu_b.astype(jnp.float32), mu_ref, atol=5e-2, rtol=5e-2)
    assert jnp.allclose(std_b.astype(jnp.float32), std_ref, atol=5e-2, rtol=5e-2)
    assert jnp.allclose(act_b.astype(jnp.float32), act_ref, atol=5e-2, rtol=5e-2)

    print("KERNEL_OK")
</pallas_src>

<mosaic_0001>
module attributes {stable_mosaic.version = 11 : i64} {
  func.func @actor_forward_kernel(%arg0: i32, %arg1: memref<256x16xf32, #tpu.memory_space<vmem>>, %arg2: memref<16x32xf32, #tpu.memory_space<vmem>>, %arg3: memref<1x32xf32, #tpu.memory_space<vmem>>, %arg4: memref<32x32xf32, #tpu.memory_space<vmem>>, %arg5: memref<1x32xf32, #tpu.memory_space<vmem>>, %arg6: memref<32x128xf32, #tpu.memory_space<vmem>>, %arg7: memref<1x128xf32, #tpu.memory_space<vmem>>, %arg8: memref<256x128xf32, #tpu.memory_space<vmem>>) attributes {dimension_semantics = [#tpu.dimension_semantics<parallel>], iteration_bounds = array<i64: 1>, scalar_prefetch = 0 : i64, scratch_operands = 0 : i64, tpu.core_type = #tpu.core_type<tc>, window_params = [{transform_indices = @transform_0, window_bounds = array<i64: 256, 16>}, {pipeline_mode = #tpu.pipeline_mode<synchronous>, transform_indices = @transform_1, window_bounds = array<i64: 16, 32>}, {pipeline_mode = #tpu.pipeline_mode<synchronous>, transform_indices = @transform_2, window_bounds = array<i64: 1, 32>}, {pipeline_mode = #tpu.pipeline_mode<synchronous>, transform_indices = @transform_3, window_bounds = array<i64: 32, 32>}, {pipeline_mode = #tpu.pipeline_mode<synchronous>, transform_indices = @transform_4, window_bounds = array<i64: 1, 32>}, {pipeline_mode = #tpu.pipeline_mode<synchronous>, transform_indices = @transform_5, window_bounds = array<i64: 32, 128>}, {pipeline_mode = #tpu.pipeline_mode<synchronous>, transform_indices = @transform_6, window_bounds = array<i64: 1, 128>}, {transform_indices = @transform_7, window_bounds = array<i64: 256, 128>}]} {
    %c0 = arith.constant 0 : index
    %c0_0 = arith.constant 0 : index
    %0 = vector.load %arg1[%c0, %c0_0] : memref<256x16xf32, #tpu.memory_space<vmem>>, vector<256x16xf32>
    %c0_1 = arith.constant 0 : index
    %c0_2 = arith.constant 0 : index
    %1 = vector.load %arg2[%c0_1, %c0_2] : memref<16x32xf32, #tpu.memory_space<vmem>>, vector<16x32xf32>
    %cst = arith.constant dense<0.000000e+00> : vector<256x32xf32>
    %2 = tpu.matmul %0, %1, %cst {dimension_numbers = #tpu.dot_dimension_numbers<[1], [0], [0], [1], [0, 0, 1, 1], [], []>} : vector<256x16xf32>, vector<16x32xf32>, vector<256x32xf32> -> vector<256x32xf32>
    %c0_3 = arith.constant 0 : index
    %c0_4 = arith.constant 0 : index
    %3 = vector.load %arg3[%c0_3, %c0_4] : memref<1x32xf32, #tpu.memory_space<vmem>>, vector<1x32xf32>
    %4 = vector.broadcast %3 : vector<1x32xf32> to vector<256x32xf32>
    %5 = arith.addf %2, %4 : vector<256x32xf32>
    %cst_5 = arith.constant 0.000000e+00 : f32
    %6 = vector.broadcast %cst_5 : f32 to vector<256x32xf32>
    %7 = arith.maximumf %5, %6 : vector<256x32xf32>
    %c0_6 = arith.constant 0 : index
    %c0_7 = arith.constant 0 : index
    %8 = vector.load %arg4[%c0_6, %c0_7] : memref<32x32xf32, #tpu.memory_space<vmem>>, vector<32x32xf32>
    %cst_8 = arith.constant dense<0.000000e+00> : vector<256x32xf32>
    %9 = tpu.matmul %7, %8, %cst_8 {dimension_numbers = #tpu.dot_dimension_numbers<[1], [0], [0], [1], [0, 0, 1, 1], [], []>} : vector<256x32xf32>, vector<32x32xf32>, vector<256x32xf32> -> vector<256x32xf32>
    %c0_9 = arith.constant 0 : index
    %c0_10 = arith.constant 0 : index
    %10 = vector.load %arg5[%c0_9, %c0_10] : memref<1x32xf32, #tpu.memory_space<vmem>>, vector<1x32xf32>
    %11 = vector.broadcast %10 : vector<1x32xf32> to vector<256x32xf32>
    %12 = arith.addf %9, %11 : vector<256x32xf32>
    %cst_11 = arith.constant 0.000000e+00 : f32
    %13 = vector.broadcast %cst_11 : f32 to vector<256x32xf32>
    %14 = arith.maximumf %12, %13 : vector<256x32xf32>
    %c0_12 = arith.constant 0 : index
    %c0_13 = arith.constant 0 : index
    %15 = vector.load %arg6[%c0_12, %c0_13] : memref<32x128xf32, #tpu.memory_space<vmem>>, vector<32x128xf32>
    %cst_14 = arith.constant dense<0.000000e+00> : vector<256x128xf32>
    %16 = tpu.matmul %14, %15, %cst_14 {dimension_numbers = #tpu.dot_dimension_numbers<[1], [0], [0], [1], [0, 0, 1, 1], [], []>} : vector<256x32xf32>, vector<32x128xf32>, vector<256x128xf32> -> vector<256x128xf32>
    %c0_15 = arith.constant 0 : index
    %c0_16 = arith.constant 0 : index
    %17 = vector.load %arg7[%c0_15, %c0_16] : memref<1x128xf32, #tpu.memory_space<vmem>>, vector<1x128xf32>
    %18 = vector.broadcast %17 : vector<1x128xf32> to vector<256x128xf32>
    %19 = arith.addf %16, %18 : vector<256x128xf32>
    %20 = tpu.iota {dimensions = array<i32: 1>} : vector<256x128xi32>
    %cst_17 = arith.constant -2.000000e+01 : f32
    %cst_18 = arith.constant 2.000000e+00 : f32
    %21 = vector.broadcast %cst_17 : f32 to vector<256x128xf32>
    %22 = arith.maximumf %21, %19 : vector<256x128xf32>
    %23 = vector.broadcast %cst_18 : f32 to vector<256x128xf32>
    %24 = arith.minimumf %23, %22 : vector<256x128xf32>
    %25 = math.exp %24 : vector<256x128xf32>
    %26 = math.tanh %19 : vector<256x128xf32>
    %cst_19 = arith.constant 1.000000e+00 : f32
    %27 = vector.broadcast %cst_19 : f32 to vector<256x128xf32>
    %28 = arith.mulf %26, %27 : vector<256x128xf32>
    %c8_i32 = arith.constant 8 : i32
    %29 = vector.broadcast %c8_i32 : i32 to vector<256x128xi32>
    %30 = arith.cmpi slt, %20, %29 : vector<256x128xi32>
    %c16_i32 = arith.constant 16 : i32
    %31 = vector.broadcast %c16_i32 : i32 to vector<256x128xi32>
    %32 = arith.cmpi slt, %20, %31 : vector<256x128xi32>
    %33 = arith.select %32, %25, %28 : vector<256x128xi1>, vector<256x128xf32>
    %34 = arith.select %30, %19, %33 : vector<256x128xi1>, vector<256x128xf32>
    %c0_20 = arith.constant 0 : index
    %c0_21 = arith.constant 0 : index
    %35 = vector.load %arg8[%c0_20, %c0_21] : memref<256x128xf32, #tpu.memory_space<vmem>>, vector<256x128xf32>
    tpu.vector_store %arg8[%c0_20, %c0_21], %34 {strides = array<i32>} : memref<256x128xf32, #tpu.memory_space<vmem>>, vector<256x128xf32>,
    return
  }
  func.func @transform_0(%arg0: i32) -> (i32, i32) {
    %c0_i32 = arith.constant 0 : i32
    %c0_i32_0 = arith.constant 0 : i32
    return %arg0, %c0_i32 : i32, i32
  }
  func.func @transform_1(%arg0: i32) -> (i32, i32) {
    %c0_i32 = arith.constant 0 : i32
    %c0_i32_0 = arith.constant 0 : i32
    %c0_i32_1 = arith.constant 0 : i32
    return %c0_i32, %c0_i32_0 : i32, i32
  }
  func.func @transform_2(%arg0: i32) -> (i32, i32) {
    %c0_i32 = arith.constant 0 : i32
    %c0_i32_0 = arith.constant 0 : i32
    %c0_i32_1 = arith.constant 0 : i32
    return %c0_i32, %c0_i32_0 : i32, i32
  }
  func.func @transform_3(%arg0: i32) -> (i32, i32) {
    %c0_i32 = arith.constant 0 : i32
    %c0_i32_0 = arith.constant 0 : i32
    %c0_i32_1 = arith.constant 0 : i32
    return %c0_i32, %c0_i32_0 : i32, i32
  }
  func.func @transform_4(%arg0: i32) -> (i32, i32) {
    %c0_i32 = arith.constant 0 : i32
    %c0_i32_0 = arith.constant 0 : i32
    %c0_i32_1 = arith.constant 0 : i32
    return %c0_i32, %c0_i32_0 : i32, i32
  }
  func.func @transform_5(%arg0: i32) -> (i32, i32) {
    %c0_i32 = arith.constant 0 : i32
    %c0_i32_0 = arith.constant 0 : i32
    %c0_i32_1 = arith.constant 0 : i32
    return %c0_i32, %c0_i32_0 : i32, i32
  }
  func.func @transform_6(%arg0: i32) -> (i32, i32) {
    %c0_i32 = arith.constant 0 : i32
    %c0_i32_0 = arith.constant 0 : i32
    %c0_i32_1 = arith.constant 0 : i32
    return %c0_i32, %c0_i32_0 : i32, i32
  }
  func.func @transform_7(%arg0: i32) -> (i32, i32) {
    %c0_i32 = arith.constant 0 : i32
    %c0_i32_0 = arith.constant 0 : i32
    return %arg0, %c0_i32 : i32, i32
  }
}

</mosaic_0001>

<llo_original>
// kernel: tpu_custom_call.1
$region0: #{tpu_custom_call.1}
  #allocation0 [shape = 'u32[]', space=smem, size = 0x4, offset = 0x4, fixed_abs, tag = 'smem constant byte address 0x4 - core index']
  #allocation1 [shape = 'u32[144,128]{1,0:T(1,128)}', space=vmem, size = 0x12000, scoped, tag = 'internal scratch']
  %s0 = inlined_call_operand.vmem [shape: f32[256,16], index: 0, kind: input, shape index: {}]
  %s1 = inlined_call_operand.vmem [shape: f32[16,32], index: 1, kind: input, shape index: {}]
  %s2 = inlined_call_operand.vmem [shape: f32[1,32], index: 2, kind: input, shape index: {}]
  %s3 = inlined_call_operand.vmem [shape: f32[32,32], index: 3, kind: input, shape index: {}]
  %s4 = inlined_call_operand.vmem [shape: f32[1,32], index: 4, kind: input, shape index: {}]
  %s5 = inlined_call_operand.vmem [shape: f32[32,128], index: 5, kind: input, shape index: {}]
  %s6 = inlined_call_operand.vmem [shape: f32[1,128], index: 6, kind: input, shape index: {}]
  %s7 = inlined_call_operand.hbm [shape: f32[256,128], index: 7, kind: output, shape index: {}]
  %s8 = sld [smem:[#allocation0]]
  $region38: #{tpu_custom_call.1} parent=0
    _
  %s10 = ssub.s32 1, %s8
  %s11 = scalar_select 0, %s10, %s8
  $region1: #{tpu_custom_call.1} parent=0
    #allocation2 [shape = 'u8[131072]{0}', space=vmem, size = 0x20000, scoped, tag = 'output window, operand 0, single buffered']
    #allocation3 [shape = 's32[1]{0}', space=sflag, size = 0x4, scoped, tag = 'scoped memory for tpu_custom_call.1']
    %12 = vsyncpa [#allocation3], 0
    // Predicated region
    $region2: #{tpu_custom_call.1} parent=1 // pred_check
      _
    $region3: #{tpu_custom_call.1} parent=1 // pred_check_branch
      %14 = sbr.rel (0) target = $region5
    $region4: #{tpu_custom_call.1} parent=1 // pred_region
      _
    $region5: #{tpu_custom_call.1} parent=1 // pred_fallthru
      _
    // Predicated region
    $region6: #{tpu_custom_call.1} parent=1 // pred_check
      _
    $region7: #{tpu_custom_call.1} parent=1 // pred_check_branch
      %16 = sbr.rel (0) target = $region9
    $region8: #{tpu_custom_call.1} parent=1 // pred_region
      _
    $region9: #{tpu_custom_call.1} parent=1 // pred_fallthru
      _
    // Predicated region
    $region10: #{tpu_custom_call.1} parent=1 // pred_check
      _
    $region11: #{tpu_custom_call.1} parent=1 // pred_check_branch
      %18 = sbr.rel (0) target = $region13
    $region12: #{tpu_custom_call.1} parent=1 // pred_region
      _
    $region13: #{tpu_custom_call.1} parent=1 // pred_fallthru
      _
    // Predicated region
    $region14: #{tpu_custom_call.1} parent=1 // pred_check
      _
    $region15: #{tpu_custom_call.1} parent=1 // pred_check_branch
      %20 = sbr.rel (0) target = $region17
    $region16: #{tpu_custom_call.1} parent=1 // pred_region
      _
    $region17: #{tpu_custom_call.1} parent=1 // pred_fallthru
      _
    // Predicated region
    $region18: #{tpu_custom_call.1} parent=1 // pred_check
      _
    $region19: #{tpu_custom_call.1} parent=1 // pred_check_branch
      %22 = sbr.rel (0) target = $region21
    $region20: #{tpu_custom_call.1} parent=1 // pred_region
      _
    $region21: #{tpu_custom_call.1} parent=1 // pred_fallthru
      _
    // Predicated region
    $region22: #{tpu_custom_call.1} parent=1 // pred_check
      _
    $region23: #{tpu_custom_call.1} parent=1 // pred_check_branch
      %24 = sbr.rel (0) target = $region25
    $region24: #{tpu_custom_call.1} parent=1 // pred_region
      _
    $region25: #{tpu_custom_call.1} parent=1 // pred_fallthru
      _
    // Predicated region
    $region26: #{tpu_custom_call.1} parent=1 // pred_check
      _
    $region27: #{tpu_custom_call.1} parent=1 // pred_check_branch
      %26 = sbr.rel (0) target = $region29
    $region28: #{tpu_custom_call.1} parent=1 // pred_region
      _
    $region29: #{tpu_custom_call.1} parent=1 // pred_fallthru
      _
    %v27 = vld [vmem:[%s0] sm:$0xff]
    %v28 = vld [vmem:[%s0 + $0x8] sm:$0xff]
    %v29 = vld [vmem:[%s0 + $0x10] sm:$0xff]
    %v30 = vld [vmem:[%s0 + $0x18] sm:$0xff]
    %v31 = vld [vmem:[%s0 + $0x20] sm:$0xff]
    %v32 = vld [vmem:[%s0 + $0x28] sm:$0xff]
    %v33 = vld [vmem:[%s0 + $0x30] sm:$0xff]
    %v34 = vld [vmem:[%s0 + $0x38] sm:$0xff]
    %v35 = vld [vmem:[%s0 + $0x40] sm:$0xff]
    %v36 = vld [vmem:[%s0 + $0x48] sm:$0xff]
    %v37 = vld [vmem:[%s0 + $0x50] sm:$0xff]
    %v38 = vld [vmem:[%s0 + $0x58] sm:$0xff]
    %v39 = vld [vmem:[%s0 + $0x60] sm:$0xff]
    %v40 = vld [vmem:[%s0 + $0x68] sm:$0xff]
    %v41 = vld [vmem:[%s0 + $0x70] sm:$0xff]
    %v42 = vld [vmem:[%s0 + $0x78] sm:$0xff]
    %v43 = vld [vmem:[%s0 + $0x80] sm:$0xff]
    %v44 = vld [vmem:[%s0 + $0x88] sm:$0xff]
    %v45 = vld [vmem:[%s0 + $0x90] sm:$0xff]
    %v46 = vld [vmem:[%s0 + $0x98] sm:$0xff]
    %v47 = vld [vmem:[%s0 + $0xa0] sm:$0xff]
    %v48 = vld [vmem:[%s0 + $0xa8] sm:$0xff]
    %v49 = vld [vmem:[%s0 + $0xb0] sm:$0xff]
    %v50 = vld [vmem:[%s0 + $0xb8] sm:$0xff]
    %v51 = vld [vmem:[%s0 + $0xc0] sm:$0xff]
    %v52 = vld [vmem:[%s0 + $0xc8] sm:$0xff]
    %v53 = vld [vmem:[%s0 + $0xd0] sm:$0xff]
    %v54 = vld [vmem:[%s0 + $0xd8] sm:$0xff]
    %v55 = vld [vmem:[%s0 + $0xe0] sm:$0xff]
    %v56 = vld [vmem:[%s0 + $0xe8] sm:$0xff]
    %v57 = vld [vmem:[%s0 + $0xf0] sm:$0xff]
    %v58 = vld [vmem:[%s0 + $0xf8] sm:$0xff]
    %v59 = vld [vmem:[%s1] sm:$0xff]
    %v60 = vld [vmem:[%s1 + $0x8] sm:$0xff]
    %v61 = vld [vmem:[%s2] sm:$0x1]
    %v63 = vlaneseq
    %v64 = vshrl.u32 %v63, 7
    %v65 = vsub.s32 0, %v64
    %v66 = vrot.slane %v61, %v65
    %vm68 = vcmask 130048
    %v70 = vsel %vm68, %v27, 0
    %v73 = vsel %vm68, %v28, 0
    %v76 = vsel %vm68, %v29, 0
    %v79 = vsel %vm68, %v30, 0
    %v82 = vsel %vm68, %v31, 0
    %v85 = vsel %vm68, %v32, 0
    %v88 = vsel %vm68, %v33, 0
    %v91 = vsel %vm68, %v34, 0
    %v94 = vsel %vm68, %v35, 0
    %v97 = vsel %vm68, %v36, 0
    %v100 = vsel %vm68, %v37, 0
    %v103 = vsel %vm68, %v38, 0
    %v106 = vsel %vm68, %v39, 0
    %v109 = vsel %vm68, %v40, 0
    %v112 = vsel %vm68, %v41, 0
    %v115 = vsel %vm68, %v42, 0
    %v118 = vsel %vm68, %v43, 0
    %v121 = vsel %vm68, %v44, 0
    %v124 = vsel %vm68, %v45, 0
    %v127 = vsel %vm68, %v46, 0
    %v130 = vsel %vm68, %v47, 0
    %v133 = vsel %vm68, %v48, 0
    %v136 = vsel %vm68, %v49, 0
    %v139 = vsel %vm68, %v50, 0
    %v142 = vsel %vm68, %v51, 0
    %v145 = vsel %vm68, %v52, 0
    %v148 = vsel %vm68, %v53, 0
    %v151 = vsel %vm68, %v54, 0
    %v154 = vsel %vm68, %v55, 0
    %v157 = vsel %vm68, %v56, 0
    %v160 = vsel %vm68, %v57, 0
    %v163 = vsel %vm68, %v58, 0
    %165 = vmatprep.subr.mxu0 0.0
    %166 = vmatpush1.msra.mxu0 0.0
    %167 = vmatprep.subr.mxu0 0.0
    %168 = vmatpush1.msra.mxu0 0.0
    %169 = vmatprep.subr.mxu0 0.0
    %170 = vmatpush1.msra.mxu0 0.0
    %171 = vmatprep.subr.mxu0 0.0
    %172 = vmatpush1.msra.mxu0 0.0
    %173 = vmatprep.subr.mxu0 0.0
    %174 = vmatpush1.msra.mxu0 0.0
    %175 = vmatprep.subr.mxu0 0.0
    %176 = vmatpush1.msra.mxu0 0.0
    %177 = vmatprep.subr.mxu0 0.0
    %178 = vmatpush1.msra.mxu0 0.0
    %179 = vmatprep.subr.mxu0 0.0
    %180 = vmatpush1.msra.mxu0 0.0
    %181 = vmatprep.subr.mxu0 0.0
    %182 = vmatpush1.msra.mxu0 0.0
    %183 = vmatprep.subr.mxu0 0.0
    %184 = vmatpush1.msra.mxu0 0.0
    %185 = vmatprep.subr.mxu0 0.0
    %186 = vmatpush1.msra.mxu0 0.0
    %187 = vmatprep.subr.mxu0 0.0
    %188 = vmatpush1.msra.mxu0 0.0
    %189 = vmatprep.subr.mxu0 0.0
    %190 = vmatpush1.msra.mxu0 0.0
    %191 = vmatprep.subr.mxu0 0.0
    %192 = vmatpush1.msra.mxu0 0.0
    %193 = vmatprep.subr.mxu0 0.0
    %194 = vmatpush1.msra.mxu0 %v60
    %195 = vmatprep.subr.mxu0 0.0
    %196 = vmatpush1.msra.mxu0 %v59
    %197 = vmatprep.subr.mxu0 0.0
    %198 = vmatpush2.msra.mxu0 0.0
    %199 = vmatprep.subr.mxu0 0.0
    %200 = vmatpush2.msra.mxu0 0.0
    %201 = vmatprep.subr.mxu0 0.0
    %202 = vmatpush2.msra.mxu0 0.0
    %203 = vmatprep.subr.mxu0 0.0
    %204 = vmatpush2.msra.mxu0 0.0
    %205 = vmatprep.subr.mxu0 0.0
    %206 = vmatpush2.msra.mxu0 0.0
    %207 = vmatprep.subr.mxu0 0.0
    %208 = vmatpush2.msra.mxu0 0.0
    %209 = vmatprep.subr.mxu0 0.0
    %210 = vmatpush2.msra.mxu0 0.0
    %211 = vmatprep.subr.mxu0 0.0
    %212 = vmatpush2.msra.mxu0 0.0
    %213 = vmatprep.subr.mxu0 0.0
    %214 = vmatpush2.msra.mxu0 0.0
    %215 = vmatprep.subr.mxu0 0.0
    %216 = vmatpush2.msra.mxu0 0.0
    %217 = vmatprep.subr.mxu0 0.0
    %218 = vmatpush2.msra.mxu0 0.0
    %219 = vmatprep.subr.mxu0 0.0
    %220 = vmatpush2.msra.mxu0 0.0
    %221 = vmatprep.subr.mxu0 0.0
    %222 = vmatpush2.msra.mxu0 0.0
    %223 = vmatprep.subr.mxu0 0.0
    %224 = vmatpush2.msra.mxu0 0.0
    %225 = vmatprep.subr.mxu0 0.0
    %226 = vmatpush2.msra.mxu0 0.0
    %227 = vmatprep.subr.mxu0 0.0
    %228 = vmatpush2.msra.mxu0 0.0
    %229 = vmatprep.mubr.f32.mxu0 0.0
    %230 = vmatmul.mubr.f32.gmra.mxu0 %v70
    %v231 = vpop.f32.mrf.mxu0
    %v232 = vadd.f32 %v66, %v231
    %v233 = vpop.f32.mrf.mxu0
    %234 = vmatprep.mubr.f32.mxu0 0.0
    %235 = vmatmul.mubr.f32.gmra.mxu0 %v73
    %v236 = vpop.f32.mrf.mxu0
    %v237 = vadd.f32 %v66, %v236
    %v238 = vpop.f32.mrf.mxu0
    %239 = vmatprep.mubr.f32.mxu0 0.0
    %240 = vmatmul.mubr.f32.gmra.mxu0 %v76
    %v241 = vpop.f32.mrf.mxu0
    %v242 = vadd.f32 %v66, %v241
    %v243 = vpop.f32.mrf.mxu0
    %244 = vmatprep.mubr.f32.mxu0 0.0
    %245 = vmatmul.mubr.f32.gmra.mxu0 %v79
    %v246 = vpop.f32.mrf.mxu0
    %v247 = vadd.f32 %v66, %v246
    %v248 = vpop.f32.mrf.mxu0
    %249 = vmatprep.mubr.f32.mxu0 0.0
    %250 = vmatmul.mubr.f32.gmra.mxu0 %v82
    %v251 = vpop.f32.mrf.mxu0
    %v252 = vadd.f32 %v66, %v251
    %v253 = vpop.f32.mrf.mxu0
    %254 = vmatprep.mubr.f32.mxu0 0.0
    %255 = vmatmul.mubr.f32.gmra.mxu0 %v85
    %v256 = vpop.f32.mrf.mxu0
    %v257 = vadd.f32 %v66, %v256
    %v258 = vpop.f32.mrf.mxu0
    %259 = vmatprep.mubr.f32.mxu0 0.0
    %260 = vmatmul.mubr.f32.gmra.mxu0 %v88
    %v261 = vpop.f32.mrf.mxu0
    %v262 = vadd.f32 %v66, %v261
    %v263 = vpop.f32.mrf.mxu0
    %264 = vmatprep.mubr.f32.mxu0 0.0
    %265 = vmatmul.mubr.f32.gmra.mxu0 %v91
    %v266 = vpop.f32.mrf.mxu0
    %v267 = vadd.f32 %v66, %v266
    %v268 = vpop.f32.mrf.mxu0
    %269 = vmatprep.mubr.f32.mxu0 0.0
    %270 = vmatmul.mubr.f32.gmra.mxu0 %v94
    %v271 = vpop.f32.mrf.mxu0
    %v272 = vadd.f32 %v66, %v271
    %v273 = vpop.f32.mrf.mxu0
    %274 = vmatprep.mubr.f32.mxu0 0.0
    %275 = vmatmul.mubr.f32.gmra.mxu0 %v97
    %v276 = vpop.f32.mrf.mxu0
    %v277 = vadd.f32 %v66, %v276
    %v278 = vpop.f32.mrf.mxu0
    %279 = vmatprep.mubr.f32.mxu0 0.0
    %280 = vmatmul.mubr.f32.gmra.mxu0 %v100
    %v281 = vpop.f32.mrf.mxu0
    %v282 = vadd.f32 %v66, %v281
    %v283 = vpop.f32.mrf.mxu0
    %284 = vmatprep.mubr.f32.mxu0 0.0
    %285 = vmatmul.mubr.f32.gmra.mxu0 %v103
    %v286 = vpop.f32.mrf.mxu0
    %v287 = vadd.f32 %v66, %v286
    %v288 = vpop.f32.mrf.mxu0
    %289 = vmatprep.mubr.f32.mxu0 0.0
    %290 = vmatmul.mubr.f32.gmra.mxu0 %v106
    %v291 = vpop.f32.mrf.mxu0
    %v292 = vadd.f32 %v66, %v291
    %v293 = vpop.f32.mrf.mxu0
    %294 = vmatprep.mubr.f32.mxu0 0.0
    %295 = vmatmul.mubr.f32.gmra.mxu0 %v109
    %v296 = vpop.f32.mrf.mxu0
    %v297 = vadd.f32 %v66, %v296
    %v298 = vpop.f32.mrf.mxu0
    %299 = vmatprep.mubr.f32.mxu0 0.0
    %300 = vmatmul.mubr.f32.gmra.mxu0 %v112
    %v301 = vpop.f32.mrf.mxu0
    %v302 = vadd.f32 %v66, %v301
    %v303 = vpop.f32.mrf.mxu0
    %304 = vmatprep.mubr.f32.mxu0 0.0
    %305 = vmatmul.mubr.f32.gmra.mxu0 %v115
    %v306 = vpop.f32.mrf.mxu0
    %v307 = vadd.f32 %v66, %v306
    %v308 = vpop.f32.mrf.mxu0
    %309 = vmatprep.mubr.f32.mxu0 0.0
    %310 = vmatmul.mubr.f32.gmra.mxu0 %v118
    %v311 = vpop.f32.mrf.mxu0
    %v312 = vadd.f32 %v66, %v311
    %v313 = vpop.f32.mrf.mxu0
    %314 = vmatprep.mubr.f32.mxu0 0.0
    %315 = vmatmul.mubr.f32.gmra.mxu0 %v121
    %v316 = vpop.f32.mrf.mxu0
    %v317 = vadd.f32 %v66, %v316
    %v318 = vpop.f32.mrf.mxu0
    %319 = vmatprep.mubr.f32.mxu0 0.0
    %320 = vmatmul.mubr.f32.gmra.mxu0 %v124
    %v321 = vpop.f32.mrf.mxu0
    %v322 = vadd.f32 %v66, %v321
    %v323 = vpop.f32.mrf.mxu0
    %324 = vmatprep.mubr.f32.mxu0 0.0
    %325 = vmatmul.mubr.f32.gmra.mxu0 %v127
    %v326 = vpop.f32.mrf.mxu0
    %v327 = vadd.f32 %v66, %v326
    %v328 = vpop.f32.mrf.mxu0
    %329 = vmatprep.mubr.f32.mxu0 0.0
    %330 = vmatmul.mubr.f32.gmra.mxu0 %v130
    %v331 = vpop.f32.mrf.mxu0
    %v332 = vadd.f32 %v66, %v331
    %v333 = vpop.f32.mrf.mxu0
    %334 = vmatprep.mubr.f32.mxu0 0.0
    %335 = vmatmul.mubr.f32.gmra.mxu0 %v133
    %v336 = vpop.f32.mrf.mxu0
    %v337 = vadd.f32 %v66, %v336
    %v338 = vpop.f32.mrf.mxu0
    %339 = vmatprep.mubr.f32.mxu0 0.0
    %340 = vmatmul.mubr.f32.gmra.mxu0 %v136
    %v341 = vpop.f32.mrf.mxu0
    %v342 = vadd.f32 %v66, %v341
    %v343 = vpop.f32.mrf.mxu0
    %344 = vmatprep.mubr.f32.mxu0 0.0
    %345 = vmatmul.mubr.f32.gmra.mxu0 %v139
    %v346 = vpop.f32.mrf.mxu0
    %v347 = vadd.f32 %v66, %v346
    %v348 = vpop.f32.mrf.mxu0
    %349 = vmatprep.mubr.f32.mxu0 0.0
    %350 = vmatmul.mubr.f32.gmra.mxu0 %v142
    %v351 = vpop.f32.mrf.mxu0
    %v352 = vadd.f32 %v66, %v351
    %v353 = vpop.f32.mrf.mxu0
    %354 = vmatprep.mubr.f32.mxu0 0.0
    %355 = vmatmul.mubr.f32.gmra.mxu0 %v145
    %v356 = vpop.f32.mrf.mxu0
    %v357 = vadd.f32 %v66, %v356
    %v358 = vpop.f32.mrf.mxu0
    %359 = vmatprep.mubr.f32.mxu0 0.0
    %360 = vmatmul.mubr.f32.gmra.mxu0 %v148
    %v361 = vpop.f32.mrf.mxu0
    %v362 = vadd.f32 %v66, %v361
    %v363 = vpop.f32.mrf.mxu0
    %364 = vmatprep.mubr.f32.mxu0 0.0
    %365 = vmatmul.mubr.f32.gmra.mxu0 %v151
    %v366 = vpop.f32.mrf.mxu0
    %v367 = vadd.f32 %v66, %v366
    %v368 = vpop.f32.mrf.mxu0
    %369 = vmatprep.mubr.f32.mxu0 0.0
    %370 = vmatmul.mubr.f32.gmra.mxu0 %v154
    %v371 = vpop.f32.mrf.mxu0
    %v372 = vadd.f32 %v66, %v371
    %v373 = vpop.f32.mrf.mxu0
    %374 = vmatprep.mubr.f32.mxu0 0.0
    %375 = vmatmul.mubr.f32.gmra.mxu0 %v157
    %v376 = vpop.f32.mrf.mxu0
    %v377 = vadd.f32 %v66, %v376
    %v378 = vpop.f32.mrf.mxu0
    %379 = vmatprep.mubr.f32.mxu0 0.0
    %380 = vmatmul.mubr.f32.gmra.mxu0 %v160
    %v381 = vpop.f32.mrf.mxu0
    %v382 = vadd.f32 %v66, %v381
    %v383 = vpop.f32.mrf.mxu0
    %384 = vmatprep.mubr.f32.mxu0 0.0
    %385 = vmatmul.mubr.f32.gmra.mxu0 %v163
    %v386 = vpop.f32.mrf.mxu0
    %v387 = vadd.f32 %v66, %v386
    %v388 = vpop.f32.mrf.mxu0
    %389 = vdwg.mxu0
    %v390 = vmax.f32 %v232, 0.0
    %v391 = vmax.f32 %v237, 0.0
    %v392 = vmax.f32 %v242, 0.0
    %v393 = vmax.f32 %v247, 0.0
    %v394 = vmax.f32 %v252, 0.0
    %v395 = vmax.f32 %v257, 0.0
    %v396 = vmax.f32 %v262, 0.0
    %v397 = vmax.f32 %v267, 0.0
    %v398 = vmax.f32 %v272, 0.0
    %v399 = vmax.f32 %v277, 0.0
    %v400 = vmax.f32 %v282, 0.0
    %v401 = vmax.f32 %v287, 0.0
    %v402 = vmax.f32 %v292, 0.0
    %v403 = vmax.f32 %v297, 0.0
    %v404 = vmax.f32 %v302, 0.0
    %v405 = vmax.f32 %v307, 0.0
    %v406 = vmax.f32 %v312, 0.0
    %v407 = vmax.f32 %v317, 0.0
    %v408 = vmax.f32 %v322, 0.0
    %v409 = vmax.f32 %v327, 0.0
    %v410 = vmax.f32 %v332, 0.0
    %v411 = vmax.f32 %v337, 0.0
    %v412 = vmax.f32 %v342, 0.0
    %v413 = vmax.f32 %v347, 0.0
    %v414 = vmax.f32 %v352, 0.0
    %v415 = vmax.f32 %v357, 0.0
    %v416 = vmax.f32 %v362, 0.0
    %v417 = vmax.f32 %v367, 0.0
    %v418 = vmax.f32 %v372, 0.0
    %v419 = vmax.f32 %v377, 0.0
    %v420 = vmax.f32 %v382, 0.0
    %v421 = vmax.f32 %v387, 0.0
    %v422 = vld [vmem:[%s3] sm:$0xff]
    %v423 = vld [vmem:[%s3 + $0x8] sm:$0xff]
    %v424 = vld [vmem:[%s3 + $0x10] sm:$0xff]
    %v425 = vld [vmem:[%s3 + $0x18] sm:$0xff]
    %v426 = vld [vmem:[%s4] sm:$0x1]
    %v428 = vlaneseq
    %v429 = vshrl.u32 %v428, 7
    %v430 = vsub.s32 0, %v429
    %v431 = vrot.slane %v426, %v430
    %vm433 = vcmask 261120
    %v435 = vsel %vm433, %v390, 0
    %v438 = vsel %vm433, %v391, 0
    %v441 = vsel %vm433, %v392, 0
    %v444 = vsel %vm433, %v393, 0
    %v447 = vsel %vm433, %v394, 0
    %v450 = vsel %vm433, %v395, 0
    %v453 = vsel %vm433, %v396, 0
    %v456 = vsel %vm433, %v397, 0
    %v459 = vsel %vm433, %v398, 0
    %v462 = vsel %vm433, %v399, 0
    %v465 = vsel %vm433, %v400, 0
    %v468 = vsel %vm433, %v401, 0
    %v471 = vsel %vm433, %v402, 0
    %v474 = vsel %vm433, %v403, 0
    %v477 = vsel %vm433, %v404, 0
    %v480 = vsel %vm433, %v405, 0
    %v483 = vsel %vm433, %v406, 0
    %v486 = vsel %vm433, %v407, 0
    %v489 = vsel %vm433, %v408, 0
    %v492 = vsel %vm433, %v409, 0
    %v495 = vsel %vm433, %v410, 0
    %v498 = vsel %vm433, %v411, 0
    %v501 = vsel %vm433, %v412, 0
    %v504 = vsel %vm433, %v413, 0
    %v507 = vsel %vm433, %v414, 0
    %v510 = vsel %vm433, %v415, 0
    %v513 = vsel %vm433, %v416, 0
    %v516 = vsel %vm433, %v417, 0
    %v519 = vsel %vm433, %v418, 0
    %v522 = vsel %vm433, %v419, 0
    %v525 = vsel %vm433, %v420, 0
    %v528 = vsel %vm433, %v421, 0
    %530 = vmatprep.subr.mxu0 0.0
    %531 = vmatpush1.msra.mxu0 0.0
    %532 = vmatprep.subr.mxu0 0.0
    %533 = vmatpush1.msra.mxu0 0.0
    %534 = vmatprep.subr.mxu0 0.0
    %535 = vmatpush1.msra.mxu0 0.0
    %536 = vmatprep.subr.mxu0 0.0
    %537 = vmatpush1.msra.mxu0 0.0
    %538 = vmatprep.subr.mxu0 0.0
    %539 = vmatpush1.msra.mxu0 0.0
    %540 = vmatprep.subr.mxu0 0.0
    %541 = vmatpush1.msra.mxu0 0.0
    %542 = vmatprep.subr.mxu0 0.0
    %543 = vmatpush1.msra.mxu0 0.0
    %544 = vmatprep.subr.mxu0 0.0
    %545 = vmatpush1.msra.mxu0 0.0
    %546 = vmatprep.subr.mxu0 0.0
    %547 = vmatpush1.msra.mxu0 0.0
    %548 = vmatprep.subr.mxu0 0.0
    %549 = vmatpush1.msra.mxu0 0.0
    %550 = vmatprep.subr.mxu0 0.0
    %551 = vmatpush1.msra.mxu0 0.0
    %552 = vmatprep.subr.mxu0 0.0
    %553 = vmatpush1.msra.mxu0 0.0
    %554 = vmatprep.subr.mxu0 0.0
    %555 = vmatpush1.msra.mxu0 %v425
    %556 = vmatprep.subr.mxu0 0.0
    %557 = vmatpush1.msra.mxu0 %v424
    %558 = vmatprep.subr.mxu0 0.0
    %559 = vmatpush1.msra.mxu0 %v423
    %560 = vmatprep.subr.mxu0 0.0
    %561 = vmatpush1.msra.mxu0 %v422
    %562 = vmatprep.subr.mxu0 0.0
    %563 = vmatpush2.msra.mxu0 0.0
    %564 = vmatprep.subr.mxu0 0.0
    %565 = vmatpush2.msra.mxu0 0.0
    %566 = vmatprep.subr.mxu0 0.0
    %567 = vmatpush2.msra.mxu0 0.0
    %568 = vmatprep.subr.mxu0 0.0
    %569 = vmatpush2.msra.mxu0 0.0
    %570 = vmatprep.subr.mxu0 0.0
    %571 = vmatpush2.msra.mxu0 0.0
    %572 = vmatprep.subr.mxu0 0.0
    %573 = vmatpush2.msra.mxu0 0.0
    %574 = vmatprep.subr.mxu0 0.0
    %575 = vmatpush2.msra.mxu0 0.0
    %576 = vmatprep.subr.mxu0 0.0
    %577 = vmatpush2.msra.mxu0 0.0
    %578 = vmatprep.subr.mxu0 0.0
    %579 = vmatpush2.msra.mxu0 0.0
    %580 = vmatprep.subr.mxu0 0.0
    %581 = vmatpush2.msra.mxu0 0.0
    %582 = vmatprep.subr.mxu0 0.0
    %583 = vmatpush2.msra.mxu0 0.0
    %584 = vmatprep.subr.mxu0 0.0
    %585 = vmatpush2.msra.mxu0 0.0
    %586 = vmatprep.subr.mxu0 0.0
    %587 = vmatpush2.msra.mxu0 0.0
    %588 = vmatprep.subr.mxu0 0.0
    %589 = vmatpush2.msra.mxu0 0.0
    %590 = vmatprep.subr.mxu0 0.0
    %591 = vmatpush2.msra.mxu0 0.0
    %592 = vmatprep.subr.mxu0 0.0
    %593 = vmatpush2.msra.mxu0 0.0
    %594 = vmatprep.mubr.f32.mxu0 0.0
    %595 = vmatmul.mubr.f32.gmra.mxu0 %v435
    %v596 = vpop.f32.mrf.mxu0
    %v597 = vadd.f32 %v431, %v596
    %v598 = vpop.f32.mrf.mxu0
    %599 = vmatprep.mubr.f32.mxu0 0.0
    %600 = vmatmul.mubr.f32.gmra.mxu0 %v438
    %v601 = vpop.f32.mrf.mxu0
    %v602 = vadd.f32 %v431, %v601
    %v603 = vpop.f32.mrf.mxu0
    %604 = vmatprep.mubr.f32.mxu0 0.0
    %605 = vmatmul.mubr.f32.gmra.mxu0 %v441
    %v606 = vpop.f32.mrf.mxu0
    %v607 = vadd.f32 %v431, %v606
    %v608 = vpop.f32.mrf.mxu0
    %609 = vmatprep.mubr.f32.mxu0 0.0
    %610 = vmatmul.mubr.f32.gmra.mxu0 %v444
    %v611 = vpop.f32.mrf.mxu0
    %v612 = vadd.f32 %v431, %v611
    %v613 = vpop.f32.mrf.mxu0
    %614 = vmatprep.mubr.f32.mxu0 0.0
    %615 = vmatmul.mubr.f32.gmra.mxu0 %v447
    %v616 = vpop.f32.mrf.mxu0
    %v617 = vadd.f32 %v431, %v616
    %v618 = vpop.f32.mrf.mxu0
    %619 = vmatprep.mubr.f32.mxu0 0.0
    %620 = vmatmul.mubr.f32.gmra.mxu0 %v450
    %v621 = vpop.f32.mrf.mxu0
    %v622 = vadd.f32 %v431, %v621
    %v623 = vpop.f32.mrf.mxu0
    %624 = vmatprep.mubr.f32.mxu0 0.0
    %625 = vmatmul.mubr.f32.gmra.mxu0 %v453
    %v626 = vpop.f32.mrf.mxu0
    %v627 = vadd.f32 %v431, %v626
    %v628 = vpop.f32.mrf.mxu0
    %629 = vmatprep.mubr.f32.mxu0 0.0
    %630 = vmatmul.mubr.f32.gmra.mxu0 %v456
    %v631 = vpop.f32.mrf.mxu0
    %v632 = vadd.f32 %v431, %v631
    %v633 = vpop.f32.mrf.mxu0
    %634 = vmatprep.mubr.f32.mxu0 0.0
    %635 = vmatmul.mubr.f32.gmra.mxu0 %v459
    %v636 = vpop.f32.mrf.mxu0
    %v637 = vadd.f32 %v431, %v636
    %v638 = vpop.f32.mrf.mxu0
    %639 = vmatprep.mubr.f32.mxu0 0.0
    %640 = vmatmul.mubr.f32.gmra.mxu0 %v462
    %v641 = vpop.f32.mrf.mxu0
    %v642 = vadd.f32 %v431, %v641
    %v643 = vpop.f32.mrf.mxu0
    %644 = vmatprep.mubr.f32.mxu0 0.0
    %645 = vmatmul.mubr.f32.gmra.mxu0 %v465
    %v646 = vpop.f32.mrf.mxu0
    %v647 = vadd.f32 %v431, %v646
    %v648 = vpop.f32.mrf.mxu0
    %649 = vmatprep.mubr.f32.mxu0 0.0
    %650 = vmatmul.mubr.f32.gmra.mxu0 %v468
    %v651 = vpop.f32.mrf.mxu0
    %v652 = vadd.f32 %v431, %v651
    %v653 = vpop.f32.mrf.mxu0
    %654 = vmatprep.mubr.f32.mxu0 0.0
    %655 = vmatmul.mubr.f32.gmra.mxu0 %v471
    %v656 = vpop.f32.mrf.mxu0
    %v657 = vadd.f32 %v431, %v656
    %v658 = vpop.f32.mrf.mxu0
    %659 = vmatprep.mubr.f32.mxu0 0.0
    %660 = vmatmul.mubr.f32.gmra.mxu0 %v474
    %v661 = vpop.f32.mrf.mxu0
    %v662 = vadd.f32 %v431, %v661
    %v663 = vpop.f32.mrf.mxu0
    %664 = vmatprep.mubr.f32.mxu0 0.0
    %665 = vmatmul.mubr.f32.gmra.mxu0 %v477
    %v666 = vpop.f32.mrf.mxu0
    %v667 = vadd.f32 %v431, %v666
    %v668 = vpop.f32.mrf.mxu0
    %669 = vmatprep.mubr.f32.mxu0 0.0
    %670 = vmatmul.mubr.f32.gmra.mxu0 %v480
    %v671 = vpop.f32.mrf.mxu0
    %v672 = vadd.f32 %v431, %v671
    %v673 = vpop.f32.mrf.mxu0
    %674 = vmatprep.mubr.f32.mxu0 0.0
    %675 = vmatmul.mubr.f32.gmra.mxu0 %v483
    %v676 = vpop.f32.mrf.mxu0
    %v677 = vadd.f32 %v431, %v676
    %v678 = vpop.f32.mrf.mxu0
    %679 = vmatprep.mubr.f32.mxu0 0.0
    %680 = vmatmul.mubr.f32.gmra.mxu0 %v486
    %v681 = vpop.f32.mrf.mxu0
    %v682 = vadd.f32 %v431, %v681
    %v683 = vpop.f32.mrf.mxu0
    %684 = vmatprep.mubr.f32.mxu0 0.0
    %685 = vmatmul.mubr.f32.gmra.mxu0 %v489
    %v686 = vpop.f32.mrf.mxu0
    %v687 = vadd.f32 %v431, %v686
    %v688 = vpop.f32.mrf.mxu0
    %689 = vmatprep.mubr.f32.mxu0 0.0
    %690 = vmatmul.mubr.f32.gmra.mxu0 %v492
    %v691 = vpop.f32.mrf.mxu0
    %v692 = vadd.f32 %v431, %v691
    %v693 = vpop.f32.mrf.mxu0
    %694 = vmatprep.mubr.f32.mxu0 0.0
    %695 = vmatmul.mubr.f32.gmra.mxu0 %v495
    %v696 = vpop.f32.mrf.mxu0
    %v697 = vadd.f32 %v431, %v696
    %v698 = vpop.f32.mrf.mxu0
    %699 = vmatprep.mubr.f32.mxu0 0.0
    %700 = vmatmul.mubr.f32.gmra.mxu0 %v498
    %v701 = vpop.f32.mrf.mxu0
    %v702 = vadd.f32 %v431, %v701
    %v703 = vpop.f32.mrf.mxu0
    %704 = vmatprep.mubr.f32.mxu0 0.0
    %705 = vmatmul.mubr.f32.gmra.mxu0 %v501
    %v706 = vpop.f32.mrf.mxu0
    %v707 = vadd.f32 %v431, %v706
    %v708 = vpop.f32.mrf.mxu0
    %709 = vmatprep.mubr.f32.mxu0 0.0
    %710 = vmatmul.mubr.f32.gmra.mxu0 %v504
    %v711 = vpop.f32.mrf.mxu0
    %v712 = vadd.f32 %v431, %v711
    %v713 = vpop.f32.mrf.mxu0
    %714 = vmatprep.mubr.f32.mxu0 0.0
    %715 = vmatmul.mubr.f32.gmra.mxu0 %v507
    %v716 = vpop.f32.mrf.mxu0
    %v717 = vadd.f32 %v431, %v716
    %v718 = vpop.f32.mrf.mxu0
    %719 = vmatprep.mubr.f32.mxu0 0.0
    %720 = vmatmul.mubr.f32.gmra.mxu0 %v510
    %v721 = vpop.f32.mrf.mxu0
    %v722 = vadd.f32 %v431, %v721
    %v723 = vpop.f32.mrf.mxu0
    %724 = vmatprep.mubr.f32.mxu0 0.0
    %725 = vmatmul.mubr.f32.gmra.mxu0 %v513
    %v726 = vpop.f32.mrf.mxu0
    %v727 = vadd.f32 %v431, %v726
    %v728 = vpop.f32.mrf.mxu0
    %729 = vmatprep.mubr.f32.mxu0 0.0
    %730 = vmatmul.mubr.f32.gmra.mxu0 %v516
    %v731 = vpop.f32.mrf.mxu0
    %v732 = vadd.f32 %v431, %v731
    %v733 = vpop.f32.mrf.mxu0
    %734 = vmatprep.mubr.f32.mxu0 0.0
    %735 = vmatmul.mubr.f32.gmra.mxu0 %v519
    %v736 = vpop.f32.mrf.mxu0
    %v737 = vadd.f32 %v431, %v736
    %v738 = vpop.f32.mrf.mxu0
    %739 = vmatprep.mubr.f32.mxu0 0.0
    %740 = vmatmul.mubr.f32.gmra.mxu0 %v522
    %v741 = vpop.f32.mrf.mxu0
    %v742 = vadd.f32 %v431, %v741
    %v743 = vpop.f32.mrf.mxu0
    %744 = vmatprep.mubr.f32.mxu0 0.0
    %745 = vmatmul.mubr.f32.gmra.mxu0 %v525
    %v746 = vpop.f32.mrf.mxu0
    %v747 = vadd.f32 %v431, %v746
    %v748 = vpop.f32.mrf.mxu0
    %749 = vmatprep.mubr.f32.mxu0 0.0
    %750 = vmatmul.mubr.f32.gmra.mxu0 %v528
    %v751 = vpop.f32.mrf.mxu0
    %v752 = vadd.f32 %v431, %v751
    %v753 = vpop.f32.mrf.mxu0
    %754 = vdwg.mxu0
    %v755 = vmax.f32 %v597, 0.0
    %v756 = vmax.f32 %v602, 0.0
    %v757 = vmax.f32 %v607, 0.0
    %v758 = vmax.f32 %v612, 0.0
    %v759 = vmax.f32 %v617, 0.0
    %v760 = vmax.f32 %v622, 0.0
    %v761 = vmax.f32 %v627, 0.0
    %v762 = vmax.f32 %v632, 0.0
    %v763 = vmax.f32 %v637, 0.0
    %v764 = vmax.f32 %v642, 0.0
    %v765 = vmax.f32 %v647, 0.0
    %v766 = vmax.f32 %v652, 0.0
    %v767 = vmax.f32 %v657, 0.0
    %v768 = vmax.f32 %v662, 0.0
    %v769 = vmax.f32 %v667, 0.0
    %v770 = vmax.f32 %v672, 0.0
    %v771 = vmax.f32 %v677, 0.0
    %v772 = vmax.f32 %v682, 0.0
    %v773 = vmax.f32 %v687, 0.0
    %v774 = vmax.f32 %v692, 0.0
    %v775 = vmax.f32 %v697, 0.0
    %v776 = vmax.f32 %v702, 0.0
    %v777 = vmax.f32 %v707, 0.0
    %v778 = vmax.f32 %v712, 0.0
    %v779 = vmax.f32 %v717, 0.0
    %v780 = vmax.f32 %v722, 0.0
    %v781 = vmax.f32 %v727, 0.0
    %v782 = vmax.f32 %v732, 0.0
    %v783 = vmax.f32 %v737, 0.0
    %v784 = vmax.f32 %v742, 0.0
    %v785 = vmax.f32 %v747, 0.0
    %v786 = vmax.f32 %v752, 0.0
    %v787 = vld [vmem:[%s5] sm:$0xff]
    %v788 = vld [vmem:[%s5 + $0x8] sm:$0xff]
    %v789 = vld [vmem:[%s5 + $0x10] sm:$0xff]
    %v790 = vld [vmem:[%s5 + $0x18] sm:$0xff]
    %v791 = vld [vmem:[%s6] sm:$0x1]
    %v793 = vlaneseq
    %v794 = vshrl.u32 %v793, 7
    %v795 = vsub.s32 0, %v794
    %v796 = vrot.slane %v791, %v795
    %v799 = vsel %vm433, %v755, 0
    %v802 = vsel %vm433, %v756, 0
    %v805 = vsel %vm433, %v757, 0
    %v808 = vsel %vm433, %v758, 0
    %v811 = vsel %vm433, %v759, 0
    %v814 = vsel %vm433, %v760, 0
    %v817 = vsel %vm433, %v761, 0
    %v820 = vsel %vm433, %v762, 0
    %v823 = vsel %vm433, %v763, 0
    %v826 = vsel %vm433, %v764, 0
    %v829 = vsel %vm433, %v765, 0
    %v832 = vsel %vm433, %v766, 0
    %v835 = vsel %vm433, %v767, 0
    %v838 = vsel %vm433, %v768, 0
    %v841 = vsel %vm433, %v769, 0
    %v844 = vsel %vm433, %v770, 0
    %v847 = vsel %vm433, %v771, 0
    %v850 = vsel %vm433, %v772, 0
    %v853 = vsel %vm433, %v773, 0
    %v856 = vsel %vm433, %v774, 0
    %v859 = vsel %vm433, %v775, 0
    %v862 = vsel %vm433, %v776, 0
    %v865 = vsel %vm433, %v777, 0
    %v868 = vsel %vm433, %v778, 0
    %v871 = vsel %vm433, %v779, 0
    %v874 = vsel %vm433, %v780, 0
    %v877 = vsel %vm433, %v781, 0
    %v880 = vsel %vm433, %v782, 0
    %v883 = vsel %vm433, %v783, 0
    %v886 = vsel %vm433, %v784, 0
    %v889 = vsel %vm433, %v785, 0
    %v892 = vsel %vm433, %v786, 0
    %894 = vmatprep.subr.mxu0 0.0
    %895 = vmatpush1.msra.mxu0 0.0
    %896 = vmatprep.subr.mxu0 0.0
    %897 = vmatpush1.msra.mxu0 0.0
    %898 = vmatprep.subr.mxu0 0.0
    %899 = vmatpush1.msra.mxu0 0.0
    %900 = vmatprep.subr.mxu0 0.0
    %901 = vmatpush1.msra.mxu0 0.0
    %902 = vmatprep.subr.mxu0 0.0
    %903 = vmatpush1.msra.mxu0 0.0
    %904 = vmatprep.subr.mxu0 0.0
    %905 = vmatpush1.msra.mxu0 0.0
    %906 = vmatprep.subr.mxu0 0.0
    %907 = vmatpush1.msra.mxu0 0.0
    %908 = vmatprep.subr.mxu0 0.0
    %909 = vmatpush1.msra.mxu0 0.0
    %910 = vmatprep.subr.mxu0 0.0
    %911 = vmatpush1.msra.mxu0 0.0
    %912 = vmatprep.subr.mxu0 0.0
    %913 = vmatpush1.msra.mxu0 0.0
    %914 = vmatprep.subr.mxu0 0.0
    %915 = vmatpush1.msra.mxu0 0.0
    %916 = vmatprep.subr.mxu0 0.0
    %917 = vmatpush1.msra.mxu0 0.0
    %918 = vmatprep.subr.mxu0 0.0
    %919 = vmatpush1.msra.mxu0 %v790
    %920 = vmatprep.subr.mxu0 0.0
    %921 = vmatpush1.msra.mxu0 %v789
    %922 = vmatprep.subr.mxu0 0.0
    %923 = vmatpush1.msra.mxu0 %v788
    %924 = vmatprep.subr.mxu0 0.0
    %925 = vmatpush1.msra.mxu0 %v787
    %926 = vmatprep.subr.mxu0 0.0
    %927 = vmatpush2.msra.mxu0 0.0
    %928 = vmatprep.subr.mxu0 0.0
    %929 = vmatpush2.msra.mxu0 0.0
    %930 = vmatprep.subr.mxu0 0.0
    %931 = vmatpush2.msra.mxu0 0.0
    %932 = vmatprep.subr.mxu0 0.0
    %933 = vmatpush2.msra.mxu0 0.0
    %934 = vmatprep.subr.mxu0 0.0
    %935 = vmatpush2.msra.mxu0 0.0
    %936 = vmatprep.subr.mxu0 0.0
    %937 = vmatpush2.msra.mxu0 0.0
    %938 = vmatprep.subr.mxu0 0.0
    %939 = vmatpush2.msra.mxu0 0.0
    %940 = vmatprep.subr.mxu0 0.0
    %941 = vmatpush2.msra.mxu0 0.0
    %942 = vmatprep.subr.mxu0 0.0
    %943 = vmatpush2.msra.mxu0 0.0
    %944 = vmatprep.subr.mxu0 0.0
    %945 = vmatpush2.msra.mxu0 0.0
    %946 = vmatprep.subr.mxu0 0.0
    %947 = vmatpush2.msra.mxu0 0.0
    %948 = vmatprep.subr.mxu0 0.0
    %949 = vmatpush2.msra.mxu0 0.0
    %950 = vmatprep.subr.mxu0 0.0
    %951 = vmatpush2.msra.mxu0 0.0
    %952 = vmatprep.subr.mxu0 0.0
    %953 = vmatpush2.msra.mxu0 0.0
    %954 = vmatprep.subr.mxu0 0.0
    %955 = vmatpush2.msra.mxu0 0.0
    %956 = vmatprep.subr.mxu0 0.0
    %957 = vmatpush2.msra.mxu0 0.0
    %958 = vmatprep.mubr.f32.mxu0 0.0
    %959 = vmatmul.mubr.f32.gmra.mxu0 %v799
    %v960 = vpop.f32.mrf.mxu0
    %v961 = vadd.f32 %v796, %v960
    %v962 = vpop.f32.mrf.mxu0
    %963 = vmatprep.mubr.f32.mxu0 0.0
    %964 = vmatmul.mubr.f32.gmra.mxu0 %v802
    %v965 = vpop.f32.mrf.mxu0
    %v966 = vadd.f32 %v796, %v965
    %v967 = vpop.f32.mrf.mxu0
    %968 = vmatprep.mubr.f32.mxu0 0.0
    %969 = vmatmul.mubr.f32.gmra.mxu0 %v805
    %v970 = vpop.f32.mrf.mxu0
    %v971 = vadd.f32 %v796, %v970
    %v972 = vpop.f32.mrf.mxu0
    %973 = vmatprep.mubr.f32.mxu0 0.0
    %974 = vmatmul.mubr.f32.gmra.mxu0 %v808
    %v975 = vpop.f32.mrf.mxu0
    %v976 = vadd.f32 %v796, %v975
    %v977 = vpop.f32.mrf.mxu0
    %978 = vmatprep.mubr.f32.mxu0 0.0
    %979 = vmatmul.mubr.f32.gmra.mxu0 %v811
    %v980 = vpop.f32.mrf.mxu0
    %v981 = vadd.f32 %v796, %v980
    %v982 = vpop.f32.mrf.mxu0
    %983 = vmatprep.mubr.f32.mxu0 0.0
    %984 = vmatmul.mubr.f32.gmra.mxu0 %v814
    %v985 = vpop.f32.mrf.mxu0
    %v986 = vadd.f32 %v796, %v985
    %v987 = vpop.f32.mrf.mxu0
    %988 = vmatprep.mubr.f32.mxu0 0.0
    %989 = vmatmul.mubr.f32.gmra.mxu0 %v817
    %v990 = vpop.f32.mrf.mxu0
    %v991 = vadd.f32 %v796, %v990
    %v992 = vpop.f32.mrf.mxu0
    %993 = vmatprep.mubr.f32.mxu0 0.0
    %994 = vmatmul.mubr.f32.gmra.mxu0 %v820
    %v995 = vpop.f32.mrf.mxu0
    %v996 = vadd.f32 %v796, %v995
    %v997 = vpop.f32.mrf.mxu0
    %998 = vmatprep.mubr.f32.mxu0 0.0
    %999 = vmatmul.mubr.f32.gmra.mxu0 %v823
    %v1000 = vpop.f32.mrf.mxu0
    %v1001 = vadd.f32 %v796, %v1000
    %v1002 = vpop.f32.mrf.mxu0
    %1003 = vmatprep.mubr.f32.mxu0 0.0
    %1004 = vmatmul.mubr.f32.gmra.mxu0 %v826
    %v1005 = vpop.f32.mrf.mxu0
    %v1006 = vadd.f32 %v796, %v1005
    %v1007 = vpop.f32.mrf.mxu0
    %1008 = vmatprep.mubr.f32.mxu0 0.0
    %1009 = vmatmul.mubr.f32.gmra.mxu0 %v829
    %v1010 = vpop.f32.mrf.mxu0
    %v1011 = vadd.f32 %v796, %v1010
    %v1012 = vpop.f32.mrf.mxu0
    %1013 = vmatprep.mubr.f32.mxu0 0.0
    %1014 = vmatmul.mubr.f32.gmra.mxu0 %v832
    %v1015 = vpop.f32.mrf.mxu0
    %v1016 = vadd.f32 %v796, %v1015
    %v1017 = vpop.f32.mrf.mxu0
    %1018 = vmatprep.mubr.f32.mxu0 0.0
    %1019 = vmatmul.mubr.f32.gmra.mxu0 %v835
    %v1020 = vpop.f32.mrf.mxu0
    %v1021 = vadd.f32 %v796, %v1020
    %v1022 = vpop.f32.mrf.mxu0
    %1023 = vmatprep.mubr.f32.mxu0 0.0
    %1024 = vmatmul.mubr.f32.gmra.mxu0 %v838
    %v1025 = vpop.f32.mrf.mxu0
    %v1026 = vadd.f32 %v796, %v1025
    %v1027 = vpop.f32.mrf.mxu0
    %1028 = vmatprep.mubr.f32.mxu0 0.0
    %1029 = vmatmul.mubr.f32.gmra.mxu0 %v841
    %v1030 = vpop.f32.mrf.mxu0
    %v1031 = vadd.f32 %v796, %v1030
    %v1032 = vpop.f32.mrf.mxu0
    %1033 = vmatprep.mubr.f32.mxu0 0.0
    %1034 = vmatmul.mubr.f32.gmra.mxu0 %v844
    %v1035 = vpop.f32.mrf.mxu0
    %v1036 = vadd.f32 %v796, %v1035
    %v1037 = vpop.f32.mrf.mxu0
    %1038 = vmatprep.mubr.f32.mxu0 0.0
    %1039 = vmatmul.mubr.f32.gmra.mxu0 %v847
    %v1040 = vpop.f32.mrf.mxu0
    %v1041 = vadd.f32 %v796, %v1040
    %v1042 = vpop.f32.mrf.mxu0
    %1043 = vmatprep.mubr.f32.mxu0 0.0
    %1044 = vmatmul.mubr.f32.gmra.mxu0 %v850
    %v1045 = vpop.f32.mrf.mxu0
    %v1046 = vadd.f32 %v796, %v1045
    %v1047 = vpop.f32.mrf.mxu0
    %1048 = vmatprep.mubr.f32.mxu0 0.0
    %1049 = vmatmul.mubr.f32.gmra.mxu0 %v853
    %v1050 = vpop.f32.mrf.mxu0
    %v1051 = vadd.f32 %v796, %v1050
    %v1052 = vpop.f32.mrf.mxu0
    %1053 = vmatprep.mubr.f32.mxu0 0.0
    %1054 = vmatmul.mubr.f32.gmra.mxu0 %v856
    %v1055 = vpop.f32.mrf.mxu0
    %v1056 = vadd.f32 %v796, %v1055
    %v1057 = vpop.f32.mrf.mxu0
    %1058 = vmatprep.mubr.f32.mxu0 0.0
    %1059 = vmatmul.mubr.f32.gmra.mxu0 %v859
    %v1060 = vpop.f32.mrf.mxu0
    %v1061 = vadd.f32 %v796, %v1060
    %v1062 = vpop.f32.mrf.mxu0
    %1063 = vmatprep.mubr.f32.mxu0 0.0
    %1064 = vmatmul.mubr.f32.gmra.mxu0 %v862
    %v1065 = vpop.f32.mrf.mxu0
    %v1066 = vadd.f32 %v796, %v1065
    %v1067 = vpop.f32.mrf.mxu0
    %1068 = vmatprep.mubr.f32.mxu0 0.0
    %1069 = vmatmul.mubr.f32.gmra.mxu0 %v865
    %v1070 = vpop.f32.mrf.mxu0
    %v1071 = vadd.f32 %v796, %v1070
    %v1072 = vpop.f32.mrf.mxu0
    %1073 = vmatprep.mubr.f32.mxu0 0.0
    %1074 = vmatmul.mubr.f32.gmra.mxu0 %v868
    %v1075 = vpop.f32.mrf.mxu0
    %v1076 = vadd.f32 %v796, %v1075
    %v1077 = vpop.f32.mrf.mxu0
    %1078 = vmatprep.mubr.f32.mxu0 0.0
    %1079 = vmatmul.mubr.f32.gmra.mxu0 %v871
    %v1080 = vpop.f32.mrf.mxu0
    %v1081 = vadd.f32 %v796, %v1080
    %v1082 = vpop.f32.mrf.mxu0
    %1083 = vmatprep.mubr.f32.mxu0 0.0
    %1084 = vmatmul.mubr.f32.gmra.mxu0 %v874
    %v1085 = vpop.f32.mrf.mxu0
    %v1086 = vadd.f32 %v796, %v1085
    %v1087 = vpop.f32.mrf.mxu0
    %1088 = vmatprep.mubr.f32.mxu0 0.0
    %1089 = vmatmul.mubr.f32.gmra.mxu0 %v877
    %v1090 = vpop.f32.mrf.mxu0
    %v1091 = vadd.f32 %v796, %v1090
    %v1092 = vpop.f32.mrf.mxu0
    %1093 = vmatprep.mubr.f32.mxu0 0.0
    %1094 = vmatmul.mubr.f32.gmra.mxu0 %v880
    %v1095 = vpop.f32.mrf.mxu0
    %v1096 = vadd.f32 %v796, %v1095
    %v1097 = vpop.f32.mrf.mxu0
    %1098 = vmatprep.mubr.f32.mxu0 0.0
    %1099 = vmatmul.mubr.f32.gmra.mxu0 %v883
    %v1100 = vpop.f32.mrf.mxu0
    %v1101 = vadd.f32 %v796, %v1100
    %v1102 = vpop.f32.mrf.mxu0
    %1103 = vmatprep.mubr.f32.mxu0 0.0
    %1104 = vmatmul.mubr.f32.gmra.mxu0 %v886
    %v1105 = vpop.f32.mrf.mxu0
    %v1106 = vadd.f32 %v796, %v1105
    %v1107 = vpop.f32.mrf.mxu0
    %1108 = vmatprep.mubr.f32.mxu0 0.0
    %1109 = vmatmul.mubr.f32.gmra.mxu0 %v889
    %v1110 = vpop.f32.mrf.mxu0
    %v1111 = vadd.f32 %v796, %v1110
    %v1112 = vpop.f32.mrf.mxu0
    %1113 = vmatprep.mubr.f32.mxu0 0.0
    %1114 = vmatmul.mubr.f32.gmra.mxu0 %v892
    %v1115 = vpop.f32.mrf.mxu0
    %v1116 = vadd.f32 %v796, %v1115
    %v1117 = vpop.f32.mrf.mxu0
    %1118 = vdwg.mxu0
    %v1119 = vlaneseq
    %v1120 = vand.u32 %v1119, 127
    %v1121 = vmax.f32 %v961, -20.0
    %v1122 = vmax.f32 %v966, -20.0
    %v1123 = vmax.f32 %v971, -20.0
    %v1124 = vmax.f32 %v976, -20.0
    %v1125 = vmax.f32 %v981, -20.0
    %v1126 = vmax.f32 %v986, -20.0
    %v1127 = vmax.f32 %v991, -20.0
    %v1128 = vmax.f32 %v996, -20.0
    %v1129 = vmax.f32 %v1001, -20.0
    %v1130 = vmax.f32 %v1006, -20.0
    %v1131 = vmax.f32 %v1011, -20.0
    %v1132 = vmax.f32 %v1016, -20.0
    %v1133 = vmax.f32 %v1021, -20.0
    %v1134 = vmax.f32 %v1026, -20.0
    %v1135 = vmax.f32 %v1031, -20.0
    %v1136 = vmax.f32 %v1036, -20.0
    %v1137 = vmax.f32 %v1041, -20.0
    %v1138 = vmax.f32 %v1046, -20.0
    %v1139 = vmax.f32 %v1051, -20.0
    %v1140 = vmax.f32 %v1056, -20.0
    %v1141 = vmax.f32 %v1061, -20.0
    %v1142 = vmax.f32 %v1066, -20.0
    %v1143 = vmax.f32 %v1071, -20.0
    %v1144 = vmax.f32 %v1076, -20.0
    %v1145 = vmax.f32 %v1081, -20.0
    %v1146 = vmax.f32 %v1086, -20.0
    %v1147 = vmax.f32 %v1091, -20.0
    %v1148 = vmax.f32 %v1096, -20.0
    %v1149 = vmax.f32 %v1101, -20.0
    %v1150 = vmax.f32 %v1106, -20.0
    %v1151 = vmax.f32 %v1111, -20.0
    %v1152 = vmax.f32 %v1116, -20.0
    %v1153 = vmin.f32 %v1121, 2.0
    %v1154 = vmin.f32 %v1122, 2.0
    %v1155 = vmin.f32 %v1123, 2.0
    %v1156 = vmin.f32 %v1124, 2.0
    %v1157 = vmin.f32 %v1125, 2.0
    %v1158 = vmin.f32 %v1126, 2.0
    %v1159 = vmin.f32 %v1127, 2.0
    %v1160 = vmin.f32 %v1128, 2.0
    %v1161 = vmin.f32 %v1129, 2.0
    %v1162 = vmin.f32 %v1130, 2.0
    %v1163 = vmin.f32 %v1131, 2.0
    %v1164 = vmin.f32 %v1132, 2.0
    %v1165 = vmin.f32 %v1133, 2.0
    %v1166 = vmin.f32 %v1134, 2.0
    %v1167 = vmin.f32 %v1135, 2.0
    %v1168 = vmin.f32 %v1136, 2.0
    %v1169 = vmin.f32 %v1137, 2.0
    %v1170 = vmin.f32 %v1138, 2.0
    %v1171 = vmin.f32 %v1139, 2.0
    %v1172 = vmin.f32 %v1140, 2.0
    %v1173 = vmin.f32 %v1141, 2.0
    %v1174 = vmin.f32 %v1142, 2.0
    %v1175 = vmin.f32 %v1143, 2.0
    %v1176 = vmin.f32 %v1144, 2.0
    %v1177 = vmin.f32 %v1145, 2.0
    %v1178 = vmin.f32 %v1146, 2.0
    %v1179 = vmin.f32 %v1147, 2.0
    %v1180 = vmin.f32 %v1148, 2.0
    %v1181 = vmin.f32 %v1149, 2.0
    %v1182 = vmin.f32 %v1150, 2.0
    %v1183 = vmin.f32 %v1151, 2.0
    %v1184 = vmin.f32 %v1152, 2.0
    %v1185 = vmul.f32 %v1153, 1.442695
    %v1186 = vpow.pop %v1185
    %v1187 = vmul.f32 %v1154, 1.442695
    %v1188 = vpow.pop %v1187
    %v1189 = vmul.f32 %v1155, 1.442695
    %v1190 = vpow.pop %v1189
    %v1191 = vmul.f32 %v1156, 1.442695
    %v1192 = vpow.pop %v1191
    %v1193 = vmul.f32 %v1157, 1.442695
    %v1194 = vpow.pop %v1193
    %v1195 = vmul.f32 %v1158, 1.442695
    %v1196 = vpow.pop %v1195
    %v1197 = vmul.f32 %v1159, 1.442695
    %v1198 = vpow.pop %v1197
    %v1199 = vmul.f32 %v1160, 1.442695
    %v1200 = vpow.pop %v1199
    %v1201 = vmul.f32 %v1161, 1.442695
    %v1202 = vpow.pop %v1201
    %v1203 = vmul.f32 %v1162, 1.442695
    %v1204 = vpow.pop %v1203
    %v1205 = vmul.f32 %v1163, 1.442695
    %v1206 = vpow.pop %v1205
    %v1207 = vmul.f32 %v1164, 1.442695
    %v1208 = vpow.pop %v1207
    %v1209 = vmul.f32 %v1165, 1.442695
    %v1210 = vpow.pop %v1209
    %v1211 = vmul.f32 %v1166, 1.442695
    %v1212 = vpow.pop %v1211
    %v1213 = vmul.f32 %v1167, 1.442695
    %v1214 = vpow.pop %v1213
    %v1215 = vmul.f32 %v1168, 1.442695
    %v1216 = vpow.pop %v1215
    %v1217 = vmul.f32 %v1169, 1.442695
    %v1218 = vpow.pop %v1217
    %v1219 = vmul.f32 %v1170, 1.442695
    %v1220 = vpow.pop %v1219
    %v1221 = vmul.f32 %v1171, 1.442695
    %v1222 = vpow.pop %v1221
    %v1223 = vmul.f32 %v1172, 1.442695
    %v1224 = vpow.pop %v1223
    %v1225 = vmul.f32 %v1173, 1.442695
    %v1226 = vpow.pop %v1225
    %v1227 = vmul.f32 %v1174, 1.442695
    %v1228 = vpow.pop %v1227
    %v1229 = vmul.f32 %v1175, 1.442695
    %v1230 = vpow.pop %v1229
    %v1231 = vmul.f32 %v1176, 1.442695
    %v1232 = vpow.pop %v1231
    %v1233 = vmul.f32 %v1177, 1.442695
    %v1234 = vpow.pop %v1233
    %v1235 = vmul.f32 %v1178, 1.442695
    %v1236 = vpow.pop %v1235
    %v1237 = vmul.f32 %v1179, 1.442695
    %v1238 = vpow.pop %v1237
    %v1239 = vmul.f32 %v1180, 1.442695
    %v1240 = vpow.pop %v1239
    %v1241 = vmul.f32 %v1181, 1.442695
    %v1242 = vpow.pop %v1241
    %v1243 = vmul.f32 %v1182, 1.442695
    %v1244 = vpow.pop %v1243
    %v1245 = vmul.f32 %v1183, 1.442695
    %v1246 = vpow.pop %v1245
    %v1247 = vmul.f32 %v1184, 1.442695
    %v1248 = vpow.pop %v1247
    %v1249 = vtanh.pop %v961
    %v1250 = vtanh.pop %v966
    %v1251 = vtanh.pop %v971
    %v1252 = vtanh.pop %v976
    %v1253 = vtanh.pop %v981
    %v1254 = vtanh.pop %v986
    %v1255 = vtanh.pop %v991
    %v1256 = vtanh.pop %v996
    %v1257 = vtanh.pop %v1001
    %v1258 = vtanh.pop %v1006
    %v1259 = vtanh.pop %v1011
    %v1260 = vtanh.pop %v1016
    %v1261 = vtanh.pop %v1021
    %v1262 = vtanh.pop %v1026
    %v1263 = vtanh.pop %v1031
    %v1264 = vtanh.pop %v1036
    %v1265 = vtanh.pop %v1041
    %v1266 = vtanh.pop %v1046
    %v1267 = vtanh.pop %v1051
    %v1268 = vtanh.pop %v1056
    %v1269 = vtanh.pop %v1061
    %v1270 = vtanh.pop %v1066
    %v1271 = vtanh.pop %v1071
    %v1272 = vtanh.pop %v1076
    %v1273 = vtanh.pop %v1081
    %v1274 = vtanh.pop %v1086
    %v1275 = vtanh.pop %v1091
    %v1276 = vtanh.pop %v1096
    %v1277 = vtanh.pop %v1101
    %v1278 = vtanh.pop %v1106
    %v1279 = vtanh.pop %v1111
    %v1280 = vtanh.pop %v1116
    %vm1281 = vcmp.lt.s32.totalorder %v1120, 8
    %vm1282 = vcmp.lt.s32.totalorder %v1120, 16
    %v1283 = vsel %vm1282, %v1186, %v1249
    %v1284 = vsel %vm1282, %v1188, %v1250
    %v1285 = vsel %vm1282, %v1190, %v1251
    %v1286 = vsel %vm1282, %v1192, %v1252
    %v1287 = vsel %vm1282, %v1194, %v1253
    %v1288 = vsel %vm1282, %v1196, %v1254
    %v1289 = vsel %vm1282, %v1198, %v1255
    %v1290 = vsel %vm1282, %v1200, %v1256
    %v1291 = vsel %vm1282, %v1202, %v1257
    %v1292 = vsel %vm1282, %v1204, %v1258
    %v1293 = vsel %vm1282, %v1206, %v1259
    %v1294 = vsel %vm1282, %v1208, %v1260
    %v1295 = vsel %vm1282, %v1210, %v1261
    %v1296 = vsel %vm1282, %v1212, %v1262
    %v1297 = vsel %vm1282, %v1214, %v1263
    %v1298 = vsel %vm1282, %v1216, %v1264
    %v1299 = vsel %vm1282, %v1218, %v1265
    %v1300 = vsel %vm1282, %v1220, %v1266
    %v1301 = vsel %vm1282, %v1222, %v1267
    %v1302 = vsel %vm1282, %v1224, %v1268
    %v1303 = vsel %vm1282, %v1226, %v1269
    %v1304 = vsel %vm1282, %v1228, %v1270
    %v1305 = vsel %vm1282, %v1230, %v1271
    %v1306 = vsel %vm1282, %v1232, %v1272
    %v1307 = vsel %vm1282, %v1234, %v1273
    %v1308 = vsel %vm1282, %v1236, %v1274
    %v1309 = vsel %vm1282, %v1238, %v1275
    %v1310 = vsel %vm1282, %v1240, %v1276
    %v1311 = vsel %vm1282, %v1242, %v1277
    %v1312 = vsel %vm1282, %v1244, %v1278
    %v1313 = vsel %vm1282, %v1246, %v1279
    %v1314 = vsel %vm1282, %v1248, %v1280
    %v1315 = vsel %vm1281, %v961, %v1283
    %v1316 = vsel %vm1281, %v966, %v1284
    %v1317 = vsel %vm1281, %v971, %v1285
    %v1318 = vsel %vm1281, %v976, %v1286
    %v1319 = vsel %vm1281, %v981, %v1287
    %v1320 = vsel %vm1281, %v986, %v1288
    %v1321 = vsel %vm1281, %v991, %v1289
    %v1322 = vsel %vm1281, %v996, %v1290
    %v1323 = vsel %vm1281, %v1001, %v1291
    %v1324 = vsel %vm1281, %v1006, %v1292
    %v1325 = vsel %vm1281, %v1011, %v1293
    %v1326 = vsel %vm1281, %v1016, %v1294
    %v1327 = vsel %vm1281, %v1021, %v1295
    %v1328 = vsel %vm1281, %v1026, %v1296
    %v1329 = vsel %vm1281, %v1031, %v1297
    %v1330 = vsel %vm1281, %v1036, %v1298
    %v1331 = vsel %vm1281, %v1041, %v1299
    %v1332 = vsel %vm1281, %v1046, %v1300
    %v1333 = vsel %vm1281, %v1051, %v1301
    %v1334 = vsel %vm1281, %v1056, %v1302
    %v1335 = vsel %vm1281, %v1061, %v1303
    %v1336 = vsel %vm1281, %v1066, %v1304
    %v1337 = vsel %vm1281, %v1071, %v1305
    %v1338 = vsel %vm1281, %v1076, %v1306
    %v1339 = vsel %vm1281, %v1081, %v1307
    %v1340 = vsel %vm1281, %v1086, %v1308
    %v1341 = vsel %vm1281, %v1091, %v1309
    %v1342 = vsel %vm1281, %v1096, %v1310
    %v1343 = vsel %vm1281, %v1101, %v1311
    %v1344 = vsel %vm1281, %v1106, %v1312
    %v1345 = vsel %vm1281, %v1111, %v1313
    %v1346 = vsel %vm1281, %v1116, %v1314
    %1347 = vst [vmem:[#allocation2] sm:$0xff] %v1315
    %1348 = vst [vmem:[#allocation2 + $0x8] sm:$0xff] %v1316
    %1349 = vst [vmem:[#allocation2 + $0x10] sm:$0xff] %v1317
    %1350 = vst [vmem:[#allocation2 + $0x18] sm:$0xff] %v1318
    %1351 = vst [vmem:[#allocation2 + $0x20] sm:$0xff] %v1319
    %1352 = vst [vmem:[#allocation2 + $0x28] sm:$0xff] %v1320
    %1353 = vst [vmem:[#allocation2 + $0x30] sm:$0xff] %v1321
    %1354 = vst [vmem:[#allocation2 + $0x38] sm:$0xff] %v1322
    %1355 = vst [vmem:[#allocation2 + $0x40] sm:$0xff] %v1323
    %1356 = vst [vmem:[#allocation2 + $0x48] sm:$0xff] %v1324
    %1357 = vst [vmem:[#allocation2 + $0x50] sm:$0xff] %v1325
    %1358 = vst [vmem:[#allocation2 + $0x58] sm:$0xff] %v1326
    %1359 = vst [vmem:[#allocation2 + $0x60] sm:$0xff] %v1327
    %1360 = vst [vmem:[#allocation2 + $0x68] sm:$0xff] %v1328
    %1361 = vst [vmem:[#allocation2 + $0x70] sm:$0xff] %v1329
    %1362 = vst [vmem:[#allocation2 + $0x78] sm:$0xff] %v1330
    %1363 = vst [vmem:[#allocation2 + $0x80] sm:$0xff] %v1331
    %1364 = vst [vmem:[#allocation2 + $0x88] sm:$0xff] %v1332
    %1365 = vst [vmem:[#allocation2 + $0x90] sm:$0xff] %v1333
    %1366 = vst [vmem:[#allocation2 + $0x98] sm:$0xff] %v1334
    %1367 = vst [vmem:[#allocation2 + $0xa0] sm:$0xff] %v1335
    %1368 = vst [vmem:[#allocation2 + $0xa8] sm:$0xff] %v1336
    %1369 = vst [vmem:[#allocation2 + $0xb0] sm:$0xff] %v1337
    %1370 = vst [vmem:[#allocation2 + $0xb8] sm:$0xff] %v1338
    %1371 = vst [vmem:[#allocation2 + $0xc0] sm:$0xff] %v1339
    %1372 = vst [vmem:[#allocation2 + $0xc8] sm:$0xff] %v1340
    %1373 = vst [vmem:[#allocation2 + $0xd0] sm:$0xff] %v1341
    %1374 = vst [vmem:[#allocation2 + $0xd8] sm:$0xff] %v1342
    %1375 = vst [vmem:[#allocation2 + $0xe0] sm:$0xff] %v1343
    %1376 = vst [vmem:[#allocation2 + $0xe8] sm:$0xff] %v1344
    %1377 = vst [vmem:[#allocation2 + $0xf0] sm:$0xff] %v1345
    %1378 = vst [vmem:[#allocation2 + $0xf8] sm:$0xff] %v1346
    // Predicated region
    $region30: #{tpu_custom_call.1} parent=1 // pred_check
      _
    $region31: #{tpu_custom_call.1} parent=1 // pred_check_branch
      %1380 = sbr.rel (0) target = $region33
    $region32: #{tpu_custom_call.1} parent=1 // pred_region
      %s1382 = ssub.s32 4096, 4096
      %1383 = vsyncadd [#allocation3], %s1382
      %s1384 = sshll.u32 [#allocation2], 4
      %s1385 = int_to_ptr.vmem [resolvable:$true] %s1384
      %1390 = dma.vmem_to_hbm [thread:$0]  %s1385, 4096, %s7, [#allocation3], 128, 128, 8
    $region33: #{tpu_custom_call.1} parent=1 // pred_fallthru
      _
    // Predicated region
    $region34: #{tpu_custom_call.1} parent=1 // pred_check
      _
    $region35: #{tpu_custom_call.1} parent=1 // pred_check_branch
      %1392 = sbr.rel (0) target = $region37
    $region36: #{tpu_custom_call.1} parent=1 // pred_region
      %1393 = dma.done [#allocation3], 4096
    $region37: #{tpu_custom_call.1} parent=1 // pred_fallthru
      _
    %1394 = vsyncpa [#allocation3], 1

</llo_original>
